<compile_context>
chip_gen: v6e
topology: v6e:2x2x1
jax: 0.10.0
libtpu: 0.0.40
codegen_flags: <defaults>
</compile_context>

<pallas_src>
import math

import jax
import jax.numpy as jnp
from jax.experimental import pallas as pl
from jax.experimental.pallas import tpu as pltpu


def _round_up(x: int, m: int) -> int:
    return ((x + m - 1) // m) * m


def _loc_kernel(value_ref, mean_ref, loc_ref):
    # (tb, Dp) + (1, Dp) broadcast on the VPU; purely HBM-bandwidth bound.
    loc_ref[...] = value_ref[...] + mean_ref[...]


def diag_normal_noise_forward(value, mean_param, log_std, *,
                              target_block_bytes=2 * 1024 * 1024):
    """Returns (loc, scale) of the Normal distribution.

    value:      (B, D) float
    mean_param: (D,) float or None (train_mean=False)
    log_std:    (D,) float

    loc has shape (B, D); scale has shape (D,) and broadcasts against loc,
    exactly like torch.distributions.Normal(value + mean, exp(log_std)).
    """
    B, D = value.shape
    dtype = value.dtype

    # scale does not depend on `value`; it is a tiny D-element vector. Compute
    # it in plain JAX in log_std's own dtype (matches the PyTorch f32 params
    # even if `value` is bf16) and let the caller broadcast lazily — exactly
    # what torch.distributions.Normal does.
    scale = jnp.exp(log_std)

    if mean_param is None:
        # PyTorch: `mean = value` -> loc IS the input tensor; zero-copy, no DMA.
        return value, scale

    # ---- lane-dense repacking (layout plumbing only) -------------------------
    # Pack several batch rows into one lane row so the last dim is a wide
    # multiple of 128 (unmasked stores, fewer grid steps). If impossible, pad
    # the lane dim to the next multiple of 128 and slice the output back.
    pack = 1
    for lane_width in (1024, 512, 256, 128):
        if lane_width % D == 0 and B % (lane_width // D) == 0:
            pack = lane_width // D
            break
    Dp = D * pack
    Bp = B // pack
    lane_pad = (_round_up(Dp, 128) - Dp) if Dp % 128 else 0

    mean_vec = jnp.tile(mean_param.astype(dtype), pack) if pack > 1 else mean_param.astype(dtype)
    if lane_pad:
        # pack == 1 in this branch by construction (packed widths are 128-multiples).
        Dp = Dp + lane_pad
        value_p = jnp.pad(value, ((0, 0), (0, lane_pad)))
        mean_p = jnp.pad(mean_vec, (0, lane_pad)).reshape(1, Dp)
    else:
        value_p = value.reshape(Bp, Dp)
        mean_p = mean_vec.reshape(1, Dp)

    # ---- tiling over the packed batch axis -----------------------------------
    bytes_per_elem = jnp.dtype(dtype).itemsize
    # ~2 MiB per buffer; (value in + loc out) double-buffered ~= 8 MiB, under
    # v5e's 16 MiB scoped-VMEM default and far under v6e/v7x limits.
    target_rows = max(8, _round_up(target_block_bytes // (Dp * bytes_per_elem), 8))
    if Bp <= 8:
        tb = Bp                                    # single full block
    else:
        # Cap block rows so the grid has >= 2 steps: lets the "parallel" axis
        # shard work across both v7x TensorCores (no-op on v5e/v6e).
        tb = min(target_rows, _round_up(pl.cdiv(Bp, 2), 8))
    grid = (pl.cdiv(Bp, tb),)

    loc_p = pl.pallas_call(
        _loc_kernel,
        out_shape=jax.ShapeDtypeStruct((Bp, Dp), dtype),
        grid_spec=pltpu.PrefetchScalarGridSpec(
            num_scalar_prefetch=0,
            grid=grid,
            in_specs=[
                pl.BlockSpec((tb, Dp), lambda i: (i, 0)),   # value block
                pl.BlockSpec((1, Dp), lambda i: (0, 0)),    # mean row (resident in VMEM)
            ],
            out_specs=pl.BlockSpec((tb, Dp), lambda i: (i, 0)),
        ),
        compiler_params=pltpu.CompilerParams(
            dimension_semantics=("parallel",),
        ),
    )(value_p, mean_p)

    if lane_pad:
        loc = loc_p[:, :D]
    else:
        loc = loc_p.reshape(B, D)
    return loc, scale


if __name__ == "__main__":
    # Module construction parameters (synthetic, deterministic):
    #   noise_dim = 32, std_init = 0.5, train_mean = True, learnable = True
    # reset_expl_params(): mean <- zeros, log_std <- log(std_init)
    noise_dim = 32
    batch = 8
    std_init = 0.5

    log_std = jnp.full((noise_dim,), math.log(std_init), dtype=jnp.float32)
    mean_param = jnp.zeros((noise_dim,), dtype=jnp.float32)

    key = jax.random.PRNGKey(0)
    value = jax.random.normal(key, (batch, noise_dim), dtype=jnp.float32)

    loc, scale = diag_normal_noise_forward(value, mean_param, log_std)
    loc, scale = jax.block_until_ready((loc, scale))

    # Pure-JAX reference check (Normal(loc, scale) parameters).
    loc_ref = value + mean_param[None, :]
    scale_ref = jnp.exp(log_std)
    assert loc.shape == (batch, noise_dim) and scale.shape == (noise_dim,)
    assert jnp.allclose(loc, loc_ref, atol=1e-6), "loc mismatch"
    assert jnp.allclose(scale, scale_ref, atol=1e-6), "scale mismatch"
    assert jnp.allclose(jnp.broadcast_to(scale[None, :], value.shape),
                        jnp.broadcast_to(scale_ref[None, :], value.shape), atol=1e-6)

    # Extra check 1: nonzero mean, non-divisible packed batch -> partial last
    # block and >= 2 grid steps (exercises the tiling / megacore path).
    k1, k2, k3 = jax.random.split(jax.random.PRNGKey(0), 3)
    value2 = jax.random.normal(k1, (1000, noise_dim), dtype=jnp.float32)
    mean2 = 0.1 * jax.random.normal(k2, (noise_dim,), dtype=jnp.float32)
    loc2, scale2 = jax.block_until_ready(diag_normal_noise_forward(value2, mean2, log_std))
    assert jnp.allclose(loc2, value2 + mean2[None, :], atol=1e-6), "loc2 mismatch"
    assert jnp.allclose(scale2, jnp.exp(log_std), atol=1e-6), "scale2 mismatch"

    # Extra check 2: lane-sparse fallback (D does not divide 128) -> wrapper
    # pads lanes to 128 and slices the output back.
    value3 = jax.random.normal(k3, (5, 24), dtype=jnp.float32)
    mean3 = jnp.arange(24, dtype=jnp.float32) * 0.01
    log_std3 = jnp.full((24,), math.log(0.3), dtype=jnp.float32)
    loc3, scale3 = jax.block_until_ready(diag_normal_noise_forward(value3, mean3, log_std3))
    assert jnp.allclose(loc3, value3 + mean3[None, :], atol=1e-6), "loc3 mismatch"
    assert jnp.allclose(scale3, jnp.exp(log_std3), atol=1e-6), "scale3 mismatch"

    # TODO(synk): torch.distributions.Normal object itself (sampling / log_prob
    # methods) is host-side API glue and is not reproduced; the kernel emits the
    # distribution's (loc, scale) parameters.

    print("KERNEL_OK")
</pallas_src>

<mosaic_0001>
module attributes {stable_mosaic.version = 11 : i64} {
  func.func @_loc_kernel(%arg0: i32, %arg1: memref<1x256xf32, #tpu.memory_space<vmem>>, %arg2: memref<1x256xf32, #tpu.memory_space<vmem>>, %arg3: memref<1x256xf32, #tpu.memory_space<vmem>>) attributes {dimension_semantics = [#tpu.dimension_semantics<parallel>], iteration_bounds = array<i64: 1>, scalar_prefetch = 0 : i64, scratch_operands = 0 : i64, tpu.core_type = #tpu.core_type<tc>, window_params = [{transform_indices = @transform_0, window_bounds = array<i64: 1, 256>}, {pipeline_mode = #tpu.pipeline_mode<synchronous>, transform_indices = @transform_1, window_bounds = array<i64: 1, 256>}, {transform_indices = @transform_2, window_bounds = array<i64: 1, 256>}]} {
    %c0 = arith.constant 0 : index
    %c0_0 = arith.constant 0 : index
    %0 = vector.load %arg1[%c0, %c0_0] : memref<1x256xf32, #tpu.memory_space<vmem>>, vector<1x256xf32>
    %c0_1 = arith.constant 0 : index
    %c0_2 = arith.constant 0 : index
    %1 = vector.load %arg2[%c0_1, %c0_2] : memref<1x256xf32, #tpu.memory_space<vmem>>, vector<1x256xf32>
    %2 = arith.addf %0, %1 : vector<1x256xf32>
    %c0_3 = arith.constant 0 : index
    %c0_4 = arith.constant 0 : index
    %3 = vector.load %arg3[%c0_3, %c0_4] : memref<1x256xf32, #tpu.memory_space<vmem>>, vector<1x256xf32>
    tpu.vector_store %arg3[%c0_3, %c0_4], %2 {strides = array<i32>} : memref<1x256xf32, #tpu.memory_space<vmem>>, vector<1x256xf32>,
    return
  }
  func.func @transform_0(%arg0: i32) -> (i32, i32) {
    %c0_i32 = arith.constant 0 : i32
    %c0_i32_0 = arith.constant 0 : i32
    return %arg0, %c0_i32 : i32, i32
  }
  func.func @transform_1(%arg0: i32) -> (i32, i32) {
    %c0_i32 = arith.constant 0 : i32
    %c0_i32_0 = arith.constant 0 : i32
    %c0_i32_1 = arith.constant 0 : i32
    return %c0_i32, %c0_i32_0 : i32, i32
  }
  func.func @transform_2(%arg0: i32) -> (i32, i32) {
    %c0_i32 = arith.constant 0 : i32
    %c0_i32_0 = arith.constant 0 : i32
    return %arg0, %c0_i32 : i32, i32
  }
}

</mosaic_0001>

<llo_original>
// kernel: tpu_custom_call.1
$region0: #{tpu_custom_call.1}
  #allocation0 [shape = 'u32[]', space=smem, size = 0x4, offset = 0x4, fixed_abs, tag = 'smem constant byte address 0x4 - core index']
  #allocation1 [shape = 'u32[144,128]{1,0:T(1,128)}', space=vmem, size = 0x12000, scoped, tag = 'internal scratch']
  %s0 = inlined_call_operand.hbm [shape: f32[1,256], index: 0, kind: input, shape index: {}]
  %s1 = inlined_call_operand.hbm [shape: f32[1,256], index: 1, kind: input, shape index: {}]
  %s2 = inlined_call_operand.hbm [shape: f32[1,256], index: 2, kind: output, shape index: {}]
  %s3 = sld [smem:[#allocation0]]
  $region26: #{tpu_custom_call.1} parent=0
    _
  %s5 = ssub.s32 1, %s3
  %s6 = scalar_select 0, %s5, %s3
  $region1: #{tpu_custom_call.1} parent=0
    #allocation2 [shape = 'u8[1024]{0}', space=vmem, size = 0x400, scoped, tag = 'input window, operand 0, single buffered']
    #allocation3 [shape = 's32[1]{0}', space=sflag, size = 0x4, scoped, tag = 'scoped memory for tpu_custom_call.1']
    #allocation4 [shape = 's32[1]{0}', space=sflag, size = 0x4, scoped, tag = 'scoped memory for tpu_custom_call.1']
    #allocation5 [shape = 'u8[1024]{0}', space=vmem, size = 0x400, scoped, tag = 'input window, operand 1, single buffered']
    #allocation6 [shape = 's32[1]{0}', space=sflag, size = 0x4, scoped, tag = 'scoped memory for tpu_custom_call.1']
    #allocation7 [shape = 'u8[1024]{0}', space=vmem, size = 0x400, scoped, tag = 'output window, operand 0, single buffered']
    %7 = vsyncpa [#allocation3], 0
    %8 = vsyncpa [#allocation6], 0
    %9 = vsyncpa [#allocation4], 0
    // Predicated region
    $region2: #{tpu_custom_call.1} parent=1 // pred_check
      _
    $region3: #{tpu_custom_call.1} parent=1 // pred_check_branch
      %11 = sbr.rel (0) target = $region5
    $region4: #{tpu_custom_call.1} parent=1 // pred_region
      %s13 = ssub.s32 32, 32
      %14 = vsyncadd [#allocation3], %s13
      %s16 = sshll.u32 [#allocation2], 4
      %s17 = int_to_ptr.vmem [resolvable:$true] %s16
      %19 = dma.hbm_to_vmem [thread:$0]  %s0, 32, %s17, [#allocation3]
    $region5: #{tpu_custom_call.1} parent=1 // pred_fallthru
      _
    // Predicated region
    $region6: #{tpu_custom_call.1} parent=1 // pred_check
      _
    $region7: #{tpu_custom_call.1} parent=1 // pred_check_branch
      %21 = sbr.rel (0) target = $region9
    $region8: #{tpu_custom_call.1} parent=1 // pred_region
      %s23 = ssub.s32 32, 32
      %24 = vsyncadd [#allocation6], %s23
      %s26 = sshll.u32 [#allocation5], 4
      %s27 = int_to_ptr.vmem [resolvable:$true] %s26
      %29 = dma.hbm_to_vmem [thread:$0]  %s1, 32, %s27, [#allocation6]
    $region9: #{tpu_custom_call.1} parent=1 // pred_fallthru
      _
    // Predicated region
    $region10: #{tpu_custom_call.1} parent=1 // pred_check
      _
    $region11: #{tpu_custom_call.1} parent=1 // pred_check_branch
      %31 = sbr.rel (0) target = $region13
    $region12: #{tpu_custom_call.1} parent=1 // pred_region
      %32 = dma.done [#allocation3], 32
    $region13: #{tpu_custom_call.1} parent=1 // pred_fallthru
      _
    // Predicated region
    $region14: #{tpu_custom_call.1} parent=1 // pred_check
      _
    $region15: #{tpu_custom_call.1} parent=1 // pred_check_branch
      %34 = sbr.rel (0) target = $region17
    $region16: #{tpu_custom_call.1} parent=1 // pred_region
      %35 = dma.done [#allocation6], 32
    $region17: #{tpu_custom_call.1} parent=1 // pred_fallthru
      _
    %v36 = vld [vmem:[#allocation2] sm:$0x3]
    %v37 = vld [vmem:[#allocation5] sm:$0x3]
    %v38 = vadd.f32 %v36, %v37
    %v39 = vlaneseq
    %vm40 = vcmp.ge.s32.totalorder %v39, 0
    %vm41 = vcmp.lt.s32.totalorder %v39, 256
    %vm42 = vmand %vm40, %vm41
    %43 = vst.msk [vmem:[#allocation7] sm:$0x3] %vm42, %v38
    // Predicated region
    $region18: #{tpu_custom_call.1} parent=1 // pred_check
      _
    $region19: #{tpu_custom_call.1} parent=1 // pred_check_branch
      %45 = sbr.rel (0) target = $region21
    $region20: #{tpu_custom_call.1} parent=1 // pred_region
      %s47 = ssub.s32 32, 32
      %48 = vsyncadd [#allocation4], %s47
      %s50 = sshll.u32 [#allocation7], 4
      %s51 = int_to_ptr.vmem [resolvable:$true] %s50
      %53 = dma.vmem_to_hbm [thread:$0]  %s51, 32, %s2, [#allocation4]
    $region21: #{tpu_custom_call.1} parent=1 // pred_fallthru
      _
    // Predicated region
    $region22: #{tpu_custom_call.1} parent=1 // pred_check
      _
    $region23: #{tpu_custom_call.1} parent=1 // pred_check_branch
      %55 = sbr.rel (0) target = $region25
    $region24: #{tpu_custom_call.1} parent=1 // pred_region
      %56 = dma.done [#allocation4], 32
    $region25: #{tpu_custom_call.1} parent=1 // pred_fallthru
      _
    %57 = vsyncpa [#allocation3], 1
    %58 = vsyncpa [#allocation6], 1
    %59 = vsyncpa [#allocation4], 1

</llo_original>
